<compile_context>
chip_gen: v7x
topology: tpu7x:2x2x1
jax: 0.10.0
libtpu: 0.0.40
codegen_flags: <defaults>
</compile_context>

<pallas_src>
from functools import partial
import math

import jax
import jax.numpy as jnp
from jax import lax
from jax.experimental import pallas as pl
from jax.experimental.pallas import tpu as pltpu


def _round_up(x, m):
    return ((x + m - 1) // m) * m


def _gaussian_smearing_kernel(dist_ref, out_ref, *, scale, scaled_start,
                              scaled_step, num_gaussians, g_pad, chunk,
                              num_chunks):
    """dist_ref: (1, TE) lane-dense row of distances; out_ref: (TE, G).

    All vector work is done lane-dense in a (G_pad, chunk) orientation
    (E on lanes, G on sublanes); each chunk is transposed via the XLU right
    before the store to preserve the (E, G) output layout.
    """
    # Pre-scaled Gaussian centers, generated once per grid step at (G_pad, 1):
    # ~G_pad/8 vregs of iota/convert/FMA, not a full tile per step.
    g_idx = lax.broadcasted_iota(jnp.int32, (g_pad, 1), 0).astype(jnp.float32)
    off_s = scaled_start + scaled_step * g_idx                  # (G_pad, 1)

    @pl.loop(0, num_chunks)
    def _(c):
        c0 = pl.multiple_of(c * chunk, chunk)
        d_s = dist_ref[:, pl.ds(c0, chunk)] * scale             # (1, chunk)
        diff = d_s - off_s                                      # (G_pad, chunk)
        vals = jnp.exp(-(diff * diff))                          # dense EUP work
        vals_t = jnp.transpose(vals, (1, 0))                    # (chunk, G_pad)
        out_ref[pl.ds(c0, chunk), :] = (
            vals_t[:, :num_gaussians].astype(out_ref.dtype))


def _pick_tile_e(e, chunk, max_tile=8192, target_steps=8):
    """Row-tile size (on the lane axis): large enough that per-step useful HBM
    traffic dominates the ~0.35 us grid-step overhead, small enough to stay
    well inside scoped VMEM with double-buffered output blocks (v5e 16 MiB
    default, v6e/v7x 32 MiB; v7x only has 64 MiB physical), and keeping
    >= target_steps blocks on large inputs so the parallel axis can shard
    across v7x's two TensorCores.  Always a multiple of `chunk` and <= e."""
    te = min(max_tile,
             (e // chunk) * chunk,
             _round_up(pl.cdiv(e, target_steps), chunk))
    return max(te, chunk)


class GaussianSmearing:
    """JAX/Pallas re-implementation of the PyTorch GaussianSmearing module."""

    def __init__(self, start=0.0, stop=5.0, num_gaussians=50,
                 out_dtype=jnp.float32, tile_e=None, chunk=256,
                 max_tile=8192, target_steps=8):
        assert num_gaussians >= 2, "num_gaussians must be >= 2 (step would be 0)"
        assert chunk % 128 == 0, "chunk must be a multiple of 128 lanes"
        assert max_tile % chunk == 0
        self.start = float(start)
        self.stop = float(stop)
        self.num_gaussians = int(num_gaussians)
        # Host-only scalars (no device sync): linspace spacing.
        step = (self.stop - self.start) / (self.num_gaussians - 1)
        self.coeff = -0.5 / step ** 2
        # Buffer kept for parity with the PyTorch module (not fed to kernel).
        self.offset = jnp.linspace(self.start, self.stop, self.num_gaussians,
                                   dtype=jnp.float32)
        # Pre-scaled constants: exp(coeff*x^2) == exp(-(s*x)^2), s = sqrt(-coeff)
        self._scale = math.sqrt(-self.coeff)
        self._scaled_start = self._scale * self.start
        self._scaled_step = self._scale * step
        self.out_dtype = out_dtype
        self.tile_e = tile_e
        self.chunk = int(chunk)
        self.max_tile = int(max_tile)
        self.target_steps = int(target_steps)

    def __call__(self, dist):
        # Flatten like dist.view(-1, 1) in the reference.
        dist_flat = jnp.reshape(dist, (-1,)).astype(jnp.float32)
        e = dist_flat.shape[0]
        g = self.num_gaussians
        tc = self.chunk

        if e < tc:
            # Tiny input: pad the cheap 1-D input up to one aligned chunk so
            # every in-kernel transpose stays (8,128)-aligned, then slice the
            # (small) output back.  Large inputs never take this path, so there
            # is no extra HBM pass over a big output.
            e_run = tc
            dist_row = jnp.pad(dist_flat, (0, tc - e)).reshape(1, tc)
            te = tc
        else:
            e_run = e
            dist_row = dist_flat.reshape(1, e)
            if self.tile_e is not None:
                te = max(tc, min(_round_up(int(self.tile_e), tc),
                                 (e // tc) * tc))
            else:
                te = _pick_tile_e(e, tc, self.max_tile, self.target_steps)

        num_chunks = te // tc
        kernel = partial(_gaussian_smearing_kernel,
                         scale=self._scale,
                         scaled_start=self._scaled_start,
                         scaled_step=self._scaled_step,
                         num_gaussians=g,
                         g_pad=_round_up(g, 8),
                         chunk=tc,
                         num_chunks=num_chunks)

        out = pl.pallas_call(
            kernel,
            out_shape=jax.ShapeDtypeStruct((e_run, g), self.out_dtype),
            grid_spec=pltpu.PrefetchScalarGridSpec(
                num_scalar_prefetch=0,
                grid=(pl.cdiv(e_run, te),),
                in_specs=[pl.BlockSpec((1, te), lambda i: (0, i))],
                out_specs=pl.BlockSpec((te, g), lambda i: (i, 0)),
            ),
            compiler_params=pltpu.CompilerParams(
                dimension_semantics=("parallel",),
                vmem_limit_bytes=32 * 1024 * 1024),
        )(dist_row)

        return out if e_run == e else out[:e]


def _reference(dist, offset, coeff):
    d = jnp.reshape(dist, (-1, 1)) - jnp.reshape(offset, (1, -1))
    return jnp.exp(coeff * d * d)


if __name__ == "__main__":
    key = jax.random.PRNGKey(0)
    k1, k2 = jax.random.split(key)
    module = GaussianSmearing(start=0.0, stop=5.0, num_gaussians=50)

    # Case 1: small "edge distance" tensor (2, 64) -> 128 flattened rows
    # (exercises the padded single-block path with an aligned transpose).
    d1 = jax.random.uniform(k1, (2, 64), minval=0.0, maxval=5.0,
                            dtype=jnp.float32)
    o1 = jax.block_until_ready(module(d1))
    r1 = _reference(d1, module.offset, module.coeff)
    assert o1.shape == (128, 50), o1.shape
    # Tolerance covers the few-ulp difference between jnp.linspace offsets and
    # the in-kernel pre-scaled start + g*step generation.
    assert jnp.allclose(o1, r1, atol=1e-4, rtol=1e-4), "case 1 mismatch"

    # Case 2: ragged row count (1000) -> multi-block grid with a masked ragged
    # last block (exercises the no-pad / no-slice large-E path).
    d2 = jax.random.uniform(k2, (1000,), minval=0.0, maxval=5.0,
                            dtype=jnp.float32)
    o2 = jax.block_until_ready(module(d2))
    r2 = _reference(d2, module.offset, module.coeff)
    assert o2.shape == (1000, 50), o2.shape
    assert jnp.allclose(o2, r2, atol=1e-4, rtol=1e-4), "case 2 mismatch"

    print("KERNEL_OK")
</pallas_src>

<mosaic_0001>
module attributes {stable_mosaic.version = 11 : i64} {
  func.func @_gaussian_smearing_kernel(%arg0: i32, %arg1: memref<1x256xf32, #tpu.memory_space<vmem>>, %arg2: memref<256x50xf32, #tpu.memory_space<vmem>>) attributes {dimension_semantics = [#tpu.dimension_semantics<parallel>], iteration_bounds = array<i64: 1>, scalar_prefetch = 0 : i64, scratch_operands = 0 : i64, tpu.core_type = #tpu.core_type<tc>, window_params = [{transform_indices = @transform_0, window_bounds = array<i64: 1, 256>}, {transform_indices = @transform_1, window_bounds = array<i64: 256, 50>}]} {
    %0 = tpu.iota {dimensions = array<i32: 0>} : vector<56x1xi32>
    %1 = arith.sitofp %0 : vector<56x1xi32> to vector<56x1xf32>
    %cst = arith.constant 0.707106769 : f32
    %2 = vector.broadcast %cst : f32 to vector<56x1xf32>
    %3 = arith.mulf %2, %1 : vector<56x1xf32>
    %cst_0 = arith.constant 0.000000e+00 : f32
    %4 = vector.broadcast %cst_0 : f32 to vector<56x1xf32>
    %5 = arith.addf %4, %3 : vector<56x1xf32>
    %c0_i32 = arith.constant 0 : i32
    %c1_i32 = arith.constant 1 : i32
    %6 = arith.muli %c0_i32, %c1_i32 : i32
    %c0_i32_1 = arith.constant 0 : i32
    %7 = arith.addi %c0_i32_1, %6 : i32
    %c256_i32 = arith.constant 256 : i32
    %8 = arith.muli %7, %c256_i32 : i32
    %9 = tpu.assume_multiple %8, 256 : i32
    %c0 = arith.constant 0 : index
    %10 = arith.index_cast %9 : i32 to index
    %11 = vector.load %arg1[%c0, %10] : memref<1x256xf32, #tpu.memory_space<vmem>>, vector<1x256xf32>
    %cst_2 = arith.constant 6.92964649 : f32
    %12 = vector.broadcast %cst_2 : f32 to vector<1x256xf32>
    %13 = arith.mulf %11, %12 : vector<1x256xf32>
    %14 = vector.broadcast %13 : vector<1x256xf32> to vector<56x256xf32>
    %15 = vector.broadcast %5 : vector<56x1xf32> to vector<56x256xf32>
    %16 = arith.subf %14, %15 : vector<56x256xf32>
    %17 = arith.mulf %16, %16 : vector<56x256xf32>
    %cst_3 = arith.constant 0.000000e+00 : f32
    %18 = vector.broadcast %cst_3 : f32 to vector<56x256xf32>
    %19 = arith.subf %18, %17 : vector<56x256xf32>
    %20 = math.exp %19 : vector<56x256xf32>
    %21 = tpu.transpose %20, [1, 0] : vector<56x256xf32> -> vector<256x56xf32>
    %22 = vector.extract_strided_slice %21 {offsets = [0, 0], sizes = [256, 50], strides = [1, 1]} : vector<256x56xf32> to vector<256x50xf32>
    %23 = arith.index_cast %9 : i32 to index
    %c0_4 = arith.constant 0 : index
    %24 = vector.load %arg2[%23, %c0_4] : memref<256x50xf32, #tpu.memory_space<vmem>>, vector<256x50xf32>
    tpu.vector_store %arg2[%23, %c0_4], %22 {strides = array<i32>} : memref<256x50xf32, #tpu.memory_space<vmem>>, vector<256x50xf32>,
    %c1_i32_5 = arith.constant 1 : i32
    return
  }
  func.func @transform_0(%arg0: i32) -> (i32, i32) {
    %c0_i32 = arith.constant 0 : i32
    %c0_i32_0 = arith.constant 0 : i32
    return %c0_i32, %arg0 : i32, i32
  }
  func.func @transform_1(%arg0: i32) -> (i32, i32) {
    %c0_i32 = arith.constant 0 : i32
    %c0_i32_0 = arith.constant 0 : i32
    return %arg0, %c0_i32 : i32, i32
  }
}

</mosaic_0001>

<llo_original>
// kernel: tpu_custom_call.1
$region0: #{tpu_custom_call.1}
  #allocation0 [shape = 'u32[]', space=smem, size = 0x4, offset = 0x4, fixed_abs, tag = 'smem constant byte address 0x4 - core index']
  #allocation1 [shape = 'u32[144,128]{1,0:T(1,128)}', space=vmem, size = 0x12000, scoped, tag = 'internal scratch']
  %s0 = inlined_call_operand.hbm [shape: f32[1,256], index: 0, kind: input, shape index: {}]
  %s1 = inlined_call_operand.vmem [shape: f32[256,50], index: 1, kind: output, shape index: {}]
  %s2 = sld [smem:[#allocation0]]
  $region18: #{tpu_custom_call.1} parent=0
    _
  %s4 = ssub.s32 1, %s2
  %s5 = scalar_select 0, %s4, %s2
  $region1: #{tpu_custom_call.1} parent=0
    #allocation2 [shape = 'u8[1024]{0}', space=vmem, size = 0x400, scoped, tag = 'input window, operand 0, single buffered']
    #allocation3 [shape = 's32[1]{0}', space=sflag, size = 0x4, scoped, tag = 'scoped memory for tpu_custom_call.1']
    %6 = vsyncpa [#allocation3], 0
    // Predicated region
    $region2: #{tpu_custom_call.1} parent=1 // pred_check
      _
    $region3: #{tpu_custom_call.1} parent=1 // pred_check_branch
      %8 = sbr.rel (0) target = $region5
    $region4: #{tpu_custom_call.1} parent=1 // pred_region
      %s10 = ssub.s32 32, 32
      %11 = vsyncadd [#allocation3], %s10
      %s13 = sshll.u32 [#allocation2], 4
      %s14 = int_to_ptr.vmem [resolvable:$true] %s13
      %16 = dma.hbm_to_vmem [thread:$0]  %s0, 32, %s14, [#allocation3]
    $region5: #{tpu_custom_call.1} parent=1 // pred_fallthru
      _
    // Predicated region
    $region6: #{tpu_custom_call.1} parent=1 // pred_check
      _
    $region7: #{tpu_custom_call.1} parent=1 // pred_check_branch
      %18 = sbr.rel (0) target = $region9
    $region8: #{tpu_custom_call.1} parent=1 // pred_region
      %19 = dma.done [#allocation3], 32
    $region9: #{tpu_custom_call.1} parent=1 // pred_fallthru
      _
    %v20 = vlaneseq
    %v21 = vshrl.u32 %v20, 7
    %v22 = vadd.s32 %v21, 8
    %v23 = vadd.s32 %v21, 16
    %v24 = vadd.s32 %v21, 24
    %v25 = vadd.s32 %v21, 32
    %v26 = vadd.s32 %v21, 40
    %v27 = vadd.s32 %v21, 48
    %v28 = vcvt.s32.f32 %v21
    %v29 = vcvt.s32.f32 %v22
    %v30 = vcvt.s32.f32 %v23
    %v31 = vcvt.s32.f32 %v24
    %v32 = vcvt.s32.f32 %v25
    %v33 = vcvt.s32.f32 %v26
    %v34 = vcvt.s32.f32 %v27
    %v35 = vmul.f32 %v28, 0.70710677
    %v36 = vmul.f32 %v29, 0.70710677
    %v37 = vmul.f32 %v30, 0.70710677
    %v38 = vmul.f32 %v31, 0.70710677
    %v39 = vmul.f32 %v32, 0.70710677
    %v40 = vmul.f32 %v33, 0.70710677
    %v41 = vmul.f32 %v34, 0.70710677
    %v42 = vadd.f32 %v35, 0.0
    %v43 = vadd.f32 %v36, 0.0
    %v44 = vadd.f32 %v37, 0.0
    %v45 = vadd.f32 %v38, 0.0
    %v46 = vadd.f32 %v39, 0.0
    %v47 = vadd.f32 %v40, 0.0
    %v48 = vadd.f32 %v41, 0.0
    %v49 = vld [vmem:[#allocation2] sm:$0x3]
    %v50 = vmul.f32 %v49, 6.9296465
    %v52 = vlaneseq
    %v53 = vshrl.u32 %v52, 7
    %v54 = vsub.s32 0, %v53
    %v55 = vrot.slane %v50, %v54
    %v56 = vlaneseq
    %v57 = vshrl.u32 %v56, 7
    %v58 = vsub.s32 1, %v57
    %v59 = vrot.slane %v50, %v58
    %v62 = vsub.f32 %v55, %v42
    %v63 = vsub.f32 %v59, %v42
    %v64 = vsub.f32 %v55, %v43
    %v65 = vsub.f32 %v59, %v43
    %v66 = vsub.f32 %v55, %v44
    %v67 = vsub.f32 %v59, %v44
    %v68 = vsub.f32 %v55, %v45
    %v69 = vsub.f32 %v59, %v45
    %v70 = vsub.f32 %v55, %v46
    %v71 = vsub.f32 %v59, %v46
    %v72 = vsub.f32 %v55, %v47
    %v73 = vsub.f32 %v59, %v47
    %v74 = vsub.f32 %v55, %v48
    %v75 = vsub.f32 %v59, %v48
    %v76 = vmul.f32 %v62, %v62
    %v77 = vmul.f32 %v63, %v63
    %v78 = vmul.f32 %v64, %v64
    %v79 = vmul.f32 %v65, %v65
    %v80 = vmul.f32 %v66, %v66
    %v81 = vmul.f32 %v67, %v67
    %v82 = vmul.f32 %v68, %v68
    %v83 = vmul.f32 %v69, %v69
    %v84 = vmul.f32 %v70, %v70
    %v85 = vmul.f32 %v71, %v71
    %v86 = vmul.f32 %v72, %v72
    %v87 = vmul.f32 %v73, %v73
    %v88 = vmul.f32 %v74, %v74
    %v89 = vmul.f32 %v75, %v75
    %v90 = vsub.f32 0.0, %v76
    %v91 = vsub.f32 0.0, %v77
    %v92 = vsub.f32 0.0, %v78
    %v93 = vsub.f32 0.0, %v79
    %v94 = vsub.f32 0.0, %v80
    %v95 = vsub.f32 0.0, %v81
    %v96 = vsub.f32 0.0, %v82
    %v97 = vsub.f32 0.0, %v83
    %v98 = vsub.f32 0.0, %v84
    %v99 = vsub.f32 0.0, %v85
    %v100 = vsub.f32 0.0, %v86
    %v101 = vsub.f32 0.0, %v87
    %v102 = vsub.f32 0.0, %v88
    %v103 = vsub.f32 0.0, %v89
    %v104 = vmul.f32 %v90, 1.442695
    %v105 = vpow.pop %v104
    %v106 = vmul.f32 %v91, 1.442695
    %v107 = vpow.pop %v106
    %v108 = vmul.f32 %v92, 1.442695
    %v109 = vpow.pop %v108
    %v110 = vmul.f32 %v93, 1.442695
    %v111 = vpow.pop %v110
    %v112 = vmul.f32 %v94, 1.442695
    %v113 = vpow.pop %v112
    %v114 = vmul.f32 %v95, 1.442695
    %v115 = vpow.pop %v114
    %v116 = vmul.f32 %v96, 1.442695
    %v117 = vpow.pop %v116
    %v118 = vmul.f32 %v97, 1.442695
    %v119 = vpow.pop %v118
    %v120 = vmul.f32 %v98, 1.442695
    %v121 = vpow.pop %v120
    %v122 = vmul.f32 %v99, 1.442695
    %v123 = vpow.pop %v122
    %v124 = vmul.f32 %v100, 1.442695
    %v125 = vpow.pop %v124
    %v126 = vmul.f32 %v101, 1.442695
    %v127 = vpow.pop %v126
    %v128 = vmul.f32 %v102, 1.442695
    %v129 = vpow.pop %v128
    %v130 = vmul.f32 %v103, 1.442695
    %v131 = vpow.pop %v130
    %132 = vxpose.xlu0.b32.start [1/16] %v105, 128
    %133 = vxpose.xlu0.b32.cont [2/16] %v109, 128
    %134 = vxpose.xlu0.b32.cont [3/16] %v113, 128
    %135 = vxpose.xlu0.b32.cont [4/16] %v117, 128
    %136 = vxpose.xlu0.b32.cont [5/16] %v121, 128
    %137 = vxpose.xlu0.b32.cont [6/16] %v125, 128
    %138 = vxpose.xlu0.b32.cont [7/16] %v129, 128
    %139 = vxpose.xlu0.b32.cont [8/16] 0.0, 128
    %140 = vxpose.xlu0.b32.cont [9/16] 0.0, 128
    %141 = vxpose.xlu0.b32.cont [10/16] 0.0, 128
    %142 = vxpose.xlu0.b32.cont [11/16] 0.0, 128
    %143 = vxpose.xlu0.b32.cont [12/16] 0.0, 128
    %144 = vxpose.xlu0.b32.cont [13/16] 0.0, 128
    %145 = vxpose.xlu0.b32.cont [14/16] 0.0, 128
    %146 = vxpose.xlu0.b32.cont [15/16] 0.0, 128
    %147 = vxpose.xlu0.b32.end [16/16] 0.0, 128
    %v148 = vpop.trf.xlu0
    %v149 = vpop.trf.xlu0
    %v150 = vpop.trf.xlu0
    %v151 = vpop.trf.xlu0
    %v152 = vpop.trf.xlu0
    %v153 = vpop.trf.xlu0
    %v154 = vpop.trf.xlu0
    %v155 = vpop.trf.xlu0
    %v156 = vpop.trf.xlu0
    %v157 = vpop.trf.xlu0
    %v158 = vpop.trf.xlu0
    %v159 = vpop.trf.xlu0
    %v160 = vpop.trf.xlu0
    %v161 = vpop.trf.xlu0
    %v162 = vpop.trf.xlu0
    %v163 = vpop.trf.xlu0
    %164 = vxpose.xlu0.b32.start [1/16] %v107, 128
    %165 = vxpose.xlu0.b32.cont [2/16] %v111, 128
    %166 = vxpose.xlu0.b32.cont [3/16] %v115, 128
    %167 = vxpose.xlu0.b32.cont [4/16] %v119, 128
    %168 = vxpose.xlu0.b32.cont [5/16] %v123, 128
    %169 = vxpose.xlu0.b32.cont [6/16] %v127, 128
    %170 = vxpose.xlu0.b32.cont [7/16] %v131, 128
    %171 = vxpose.xlu0.b32.cont [8/16] 0.0, 128
    %172 = vxpose.xlu0.b32.cont [9/16] 0.0, 128
    %173 = vxpose.xlu0.b32.cont [10/16] 0.0, 128
    %174 = vxpose.xlu0.b32.cont [11/16] 0.0, 128
    %175 = vxpose.xlu0.b32.cont [12/16] 0.0, 128
    %176 = vxpose.xlu0.b32.cont [13/16] 0.0, 128
    %177 = vxpose.xlu0.b32.cont [14/16] 0.0, 128
    %178 = vxpose.xlu0.b32.cont [15/16] 0.0, 128
    %179 = vxpose.xlu0.b32.end [16/16] 0.0, 128
    %v180 = vpop.trf.xlu0
    %v181 = vpop.trf.xlu0
    %v182 = vpop.trf.xlu0
    %v183 = vpop.trf.xlu0
    %v184 = vpop.trf.xlu0
    %v185 = vpop.trf.xlu0
    %v186 = vpop.trf.xlu0
    %v187 = vpop.trf.xlu0
    %v188 = vpop.trf.xlu0
    %v189 = vpop.trf.xlu0
    %v190 = vpop.trf.xlu0
    %v191 = vpop.trf.xlu0
    %v192 = vpop.trf.xlu0
    %v193 = vpop.trf.xlu0
    %v194 = vpop.trf.xlu0
    %v195 = vpop.trf.xlu0
    %vm196 = vcmask 408576
    %197 = vst.msk [vmem:[%s1] sm:$0xff] %vm196, %v148
    %198 = vst.msk [vmem:[%s1 + $0x8] sm:$0xff] %vm196, %v149
    %199 = vst.msk [vmem:[%s1 + $0x10] sm:$0xff] %vm196, %v150
    %200 = vst.msk [vmem:[%s1 + $0x18] sm:$0xff] %vm196, %v151
    %201 = vst.msk [vmem:[%s1 + $0x20] sm:$0xff] %vm196, %v152
    %202 = vst.msk [vmem:[%s1 + $0x28] sm:$0xff] %vm196, %v153
    %203 = vst.msk [vmem:[%s1 + $0x30] sm:$0xff] %vm196, %v154
    %204 = vst.msk [vmem:[%s1 + $0x38] sm:$0xff] %vm196, %v155
    %205 = vst.msk [vmem:[%s1 + $0x40] sm:$0xff] %vm196, %v156
    %206 = vst.msk [vmem:[%s1 + $0x48] sm:$0xff] %vm196, %v157
    %207 = vst.msk [vmem:[%s1 + $0x50] sm:$0xff] %vm196, %v158
    %208 = vst.msk [vmem:[%s1 + $0x58] sm:$0xff] %vm196, %v159
    %209 = vst.msk [vmem:[%s1 + $0x60] sm:$0xff] %vm196, %v160
    %210 = vst.msk [vmem:[%s1 + $0x68] sm:$0xff] %vm196, %v161
    %211 = vst.msk [vmem:[%s1 + $0x70] sm:$0xff] %vm196, %v162
    %212 = vst.msk [vmem:[%s1 + $0x78] sm:$0xff] %vm196, %v163
    %213 = vst.msk [vmem:[%s1 + $0x80] sm:$0xff] %vm196, %v180
    %214 = vst.msk [vmem:[%s1 + $0x88] sm:$0xff] %vm196, %v181
    %215 = vst.msk [vmem:[%s1 + $0x90] sm:$0xff] %vm196, %v182
    %216 = vst.msk [vmem:[%s1 + $0x98] sm:$0xff] %vm196, %v183
    %217 = vst.msk [vmem:[%s1 + $0xa0] sm:$0xff] %vm196, %v184
    %218 = vst.msk [vmem:[%s1 + $0xa8] sm:$0xff] %vm196, %v185
    %219 = vst.msk [vmem:[%s1 + $0xb0] sm:$0xff] %vm196, %v186
    %220 = vst.msk [vmem:[%s1 + $0xb8] sm:$0xff] %vm196, %v187
    %221 = vst.msk [vmem:[%s1 + $0xc0] sm:$0xff] %vm196, %v188
    %222 = vst.msk [vmem:[%s1 + $0xc8] sm:$0xff] %vm196, %v189
    %223 = vst.msk [vmem:[%s1 + $0xd0] sm:$0xff] %vm196, %v190
    %224 = vst.msk [vmem:[%s1 + $0xd8] sm:$0xff] %vm196, %v191
    %225 = vst.msk [vmem:[%s1 + $0xe0] sm:$0xff] %vm196, %v192
    %226 = vst.msk [vmem:[%s1 + $0xe8] sm:$0xff] %vm196, %v193
    %227 = vst.msk [vmem:[%s1 + $0xf0] sm:$0xff] %vm196, %v194
    %228 = vst.msk [vmem:[%s1 + $0xf8] sm:$0xff] %vm196, %v195
    // Predicated region
    $region10: #{tpu_custom_call.1} parent=1 // pred_check
      _
    $region11: #{tpu_custom_call.1} parent=1 // pred_check_branch
      %230 = sbr.rel (0) target = $region13
    $region12: #{tpu_custom_call.1} parent=1 // pred_region
      _
    $region13: #{tpu_custom_call.1} parent=1 // pred_fallthru
      _
    // Predicated region
    $region14: #{tpu_custom_call.1} parent=1 // pred_check
      _
    $region15: #{tpu_custom_call.1} parent=1 // pred_check_branch
      %232 = sbr.rel (0) target = $region17
    $region16: #{tpu_custom_call.1} parent=1 // pred_region
      _
    $region17: #{tpu_custom_call.1} parent=1 // pred_fallthru
      _
    %233 = vsyncpa [#allocation3], 1

</llo_original>
